<compile_context>
chip_gen: v7x
topology: tpu7x:2x2x1
jax: 0.10.0
libtpu: 0.0.40
codegen_flags: <defaults>
</compile_context>

<pallas_src>
import jax
import jax.numpy as jnp
from jax.experimental import pallas as pl
from jax.experimental.pallas import tpu as pltpu


# ---------------------------------------------------------------------------
# Helpers
# ---------------------------------------------------------------------------
def _round_up(x, m):
    return ((x + m - 1) // m) * m


def _choose_tile(dim, unit, max_tile, slack_frac=0.1):
    """Pick (tile, padded_dim): tile is a multiple of `unit`, <= max_tile.

    If the dim (padded to `unit`) fits in one tile, use exactly that (zero
    extra padding).  Otherwise prefer the largest tile whose padded extent is
    within `slack_frac` (but at least one `unit`) of the minimum achievable
    padding, so awkward dims neither explode padding waste nor force tiny
    tiles.  slack_frac=0 -> strictly minimal padding, largest such tile.
    """
    dim_p = _round_up(max(dim, 1), unit)
    max_tile = max(unit, min(_round_up(max_tile, unit), dim_p))
    if dim_p <= max_tile:
        return dim_p, dim_p
    cands = [(t, _round_up(dim_p, t)) for t in range(unit, max_tile + 1, unit)]
    min_pad = min(p for _, p in cands)
    allow = min_pad + max(int(slack_frac * dim_p), unit if slack_frac > 0 else 0)
    t_best, p_best = max((t, p) for t, p in cands if p <= allow)
    return t_best, p_best


def _tpu_generation():
    try:
        kind = jax.devices()[0].device_kind.lower()
    except Exception:
        return "unknown"
    if "v7" in kind:
        return "v7"
    if "v6" in kind or "trillium" in kind:
        return "v6"
    if "v5 lite" in kind or "v5e" in kind or "v5litepod" in kind:
        return "v5e"
    return "unknown"


# (tm, tn, tk) per generation: large enough to clear the HBM roofline,
# small enough that double-buffered tiles stay well under 32 MiB of VMEM.
_TILE_DEFAULTS = {
    "v5e": (512, 512, 1024),
    "v6": (1024, 1024, 512),
    "v7": (512, 1024, 512),
    "unknown": (512, 512, 512),
}

_SMALL_W_BYTES = 2 * 1024 * 1024   # resident-weight fast path threshold
_SMALL_DIM_MAX = 2048              # keep per-M-tile x / out buffers bounded


# ---------------------------------------------------------------------------
# Kernels
# ---------------------------------------------------------------------------
def _small_kernel(x_ref, w_ref, b_ref, o_ref):
    """Resident-weight path: whole W + bias live in VMEM; one M tile per step."""
    x = x_ref[...]
    if x.dtype != w_ref.dtype:
        x = x.astype(w_ref.dtype)  # per-tile cast in VMEM; no HBM pre-pass
    o_ref[...] = (
        jnp.dot(x, w_ref[...], preferred_element_type=jnp.float32) + b_ref[...]
    ).astype(o_ref.dtype)


def _tiled_kernel_f32out(x_ref, w_ref, b_ref, o_ref):
    """f32 output: accumulate directly into the resident output tile (no scratch)."""
    k = pl.program_id(2)

    @pl.when(k == 0)
    def _init():
        # Seed the accumulator with the (broadcast) bias -> single bias add.
        o_ref[...] = jnp.zeros_like(o_ref) + b_ref[...]

    o_ref[...] += jnp.dot(x_ref[...], w_ref[...], preferred_element_type=jnp.float32)


def _tiled_kernel_scratch(x_ref, w_ref, b_ref, o_ref, acc_ref):
    """Narrow output dtype: f32 VMEM accumulator, bias add + cast at last K step."""
    k = pl.program_id(2)

    @pl.when(k == 0)
    def _init():
        acc_ref[...] = jnp.zeros_like(acc_ref)

    acc_ref[...] += jnp.dot(x_ref[...], w_ref[...], preferred_element_type=jnp.float32)

    @pl.when(k == pl.num_programs(2) - 1)
    def _fin():
        o_ref[...] = (acc_ref[...] + b_ref[...]).astype(o_ref.dtype)


# ---------------------------------------------------------------------------
# Wrapper
# ---------------------------------------------------------------------------
def langevin_layer(
    x,
    weights,
    biases,
    *,
    compute_dtype=None,          # default: x.dtype (f32 -> matches torch.mm exactly)
    tm=None,
    tn=None,
    tk=None,
    vmem_limit_bytes=32 * 1024 * 1024,
    force_tiled=False,           # debug: skip the resident-weight fast path
):
    """Pallas equivalent of `torch.mm(x, weights) + biases`."""
    M, K = x.shape
    K2, N = weights.shape
    assert K == K2, "input_dim mismatch"
    out_dtype = x.dtype
    compute_dtype = jnp.dtype(compute_dtype if compute_dtype is not None else x.dtype)
    csize = compute_dtype.itemsize
    # Sub-32-bit dtypes pack rows along sublanes -> keep M tiles at 16/32 grain.
    sublane = max(32 // csize, 32 // jnp.dtype(x.dtype).itemsize)

    gen = _tpu_generation()
    d_tm, d_tn, d_tk = _TILE_DEFAULTS[gen]

    # ----------------------------------------------------------------------
    # Fast path: tiny weight matrix (the module's real case is 32x16).
    # W and bias are DMA'd once and stay resident; no K/N padding at all.
    # ----------------------------------------------------------------------
    small = (
        not force_tiled
        and K <= _SMALL_DIM_MAX
        and N <= _SMALL_DIM_MAX
        and K * N * csize <= _SMALL_W_BYTES
    )
    if small:
        tm_eff, Mp = _choose_tile(M, sublane, tm if tm is not None else 512)
        xp = x if Mp == M else jnp.pad(x, ((0, Mp - M), (0, 0)))
        wp = weights if weights.dtype == compute_dtype else weights.astype(compute_dtype)
        bp = biases.reshape(1, N).astype(jnp.float32)

        out = pl.pallas_call(
            _small_kernel,
            out_shape=jax.ShapeDtypeStruct((Mp, N), out_dtype),
            grid_spec=pltpu.PrefetchScalarGridSpec(
                num_scalar_prefetch=0,
                grid=(Mp // tm_eff,),
                in_specs=[
                    pl.BlockSpec((tm_eff, K), lambda i: (i, 0)),
                    pl.BlockSpec((K, N), lambda i: (0, 0)),   # resident weight
                    pl.BlockSpec((1, N), lambda i: (0, 0)),   # resident bias
                ],
                out_specs=pl.BlockSpec((tm_eff, N), lambda i: (i, 0)),
            ),
            compiler_params=pltpu.CompilerParams(
                dimension_semantics=("parallel",),
                vmem_limit_bytes=vmem_limit_bytes,
            ),
        )(xp, wp, bp)
        return out[:M] if Mp != M else out

    # ----------------------------------------------------------------------
    # General tiled path: (M-tiles, N-tiles, K-tiles) grid, K trailing.
    # ----------------------------------------------------------------------
    tm_eff, Mp = _choose_tile(M, sublane, tm if tm is not None else d_tm)
    tn_eff, Np = _choose_tile(N, 128, tn if tn is not None else d_tn)
    tk_eff, Kp = _choose_tile(K, 128, tk if tk is not None else d_tk, slack_frac=0.0)

    # v7x has 2 TensorCores: ensure at least one parallel axis has >= 2 blocks.
    if gen == "v7" and (Mp // tm_eff) == 1 and (Np // tn_eff) == 1:
        if tn_eff % 256 == 0:
            tn_eff //= 2
        elif tm_eff % (2 * sublane) == 0:
            tm_eff //= 2

    xp = x if x.dtype == compute_dtype else x.astype(compute_dtype)
    wp = weights if weights.dtype == compute_dtype else weights.astype(compute_dtype)
    bp = biases.reshape(1, N).astype(jnp.float32)
    if (Mp, Kp) != (M, K):
        xp = jnp.pad(xp, ((0, Mp - M), (0, Kp - K)))
    if (Kp, Np) != (K, N):
        wp = jnp.pad(wp, ((0, Kp - K), (0, Np - N)))
    if Np != N:
        bp = jnp.pad(bp, ((0, 0), (0, Np - N)))

    grid = (Mp // tm_eff, Np // tn_eff, Kp // tk_eff)
    in_specs = [
        pl.BlockSpec((tm_eff, tk_eff), lambda i, j, k: (i, k)),
        pl.BlockSpec((tk_eff, tn_eff), lambda i, j, k: (k, j)),
        pl.BlockSpec((1, tn_eff), lambda i, j, k: (0, j)),
    ]
    out_spec = pl.BlockSpec((tm_eff, tn_eff), lambda i, j, k: (i, j))

    if jnp.dtype(out_dtype) == jnp.dtype(jnp.float32):
        kernel = _tiled_kernel_f32out          # accumulate in the output tile
        scratch = []
    else:
        kernel = _tiled_kernel_scratch          # f32 scratch accumulator
        scratch = [pltpu.VMEM((tm_eff, tn_eff), jnp.float32)]

    out = pl.pallas_call(
        kernel,
        out_shape=jax.ShapeDtypeStruct((Mp, Np), out_dtype),
        grid_spec=pltpu.PrefetchScalarGridSpec(
            num_scalar_prefetch=0,
            grid=grid,
            in_specs=in_specs,
            out_specs=out_spec,
            scratch_shapes=scratch,
        ),
        compiler_params=pltpu.CompilerParams(
            dimension_semantics=("parallel", "parallel", "arbitrary"),
            vmem_limit_bytes=vmem_limit_bytes,
        ),
    )(xp, wp, bp)

    if (Mp, Np) != (M, N):
        out = out[:M, :N]
    return out


# ---------------------------------------------------------------------------
# Self-test
# ---------------------------------------------------------------------------
if __name__ == "__main__":
    key = jax.random.PRNGKey(0)
    kx, kw, kb, kx2, kw2, kb2, kx3, kw3, kb3 = jax.random.split(key, 9)

    # --- 1. The module's actual shapes: batch=8, input_dim=32, output_dim=16.
    #        f32 end-to-end (matches torch.mm), resident-weight fast path.
    batch, input_dim, output_dim = 8, 32, 16
    weights = jax.random.uniform(kw, (input_dim, output_dim), jnp.float32, -0.01, 0.01)
    biases = jax.random.uniform(kb, (output_dim,), jnp.float32, -0.01, 0.01)
    x = jax.random.normal(kx, (batch, input_dim), jnp.float32)

    out = jax.block_until_ready(langevin_layer(x, weights, biases))
    ref = x @ weights + biases
    assert out.shape == (batch, output_dim) and out.dtype == jnp.float32
    assert jnp.allclose(out, ref, atol=1e-5, rtol=1e-5)

    # Optional bf16 MXU path (x cast per-tile in VMEM, f32 accumulation).
    out_bf = jax.block_until_ready(
        langevin_layer(x, weights, biases, compute_dtype=jnp.bfloat16)
    )
    ref_bf = (
        x.astype(jnp.bfloat16).astype(jnp.float32)
        @ weights.astype(jnp.bfloat16).astype(jnp.float32)
        + biases
    )
    assert jnp.allclose(out_bf, ref_bf, atol=1e-4, rtol=1e-4)

    # --- 2. Larger layer: W too big for the resident-weight path, so it runs
    #        the general tiled grid with the f32 accumulate-into-output kernel
    #        (shapes chosen so no padding copies are needed).
    M2, K2_, N2 = 384, 640, 896
    x2 = jax.random.normal(kx2, (M2, K2_), jnp.float32)
    w2 = jax.random.uniform(kw2, (K2_, N2), jnp.float32, -0.01, 0.01)
    b2 = jax.random.uniform(kb2, (N2,), jnp.float32, -0.01, 0.01)
    out2 = jax.block_until_ready(langevin_layer(x2, w2, b2))
    ref2 = x2 @ w2 + b2
    assert out2.shape == (M2, N2)
    assert jnp.allclose(out2, ref2, atol=1e-4, rtol=1e-4)

    # --- 3. Non-aligned bf16 case forced down the tiled path: exercises the
    #        f32 scratch-accumulator kernel plus padding and slicing.
    M3, K3, N3 = 100, 200, 176
    x3 = jax.random.normal(kx3, (M3, K3), jnp.float32).astype(jnp.bfloat16)
    w3 = jax.random.uniform(kw3, (K3, N3), jnp.float32, -0.01, 0.01).astype(jnp.bfloat16)
    b3 = jax.random.uniform(kb3, (N3,), jnp.float32, -0.01, 0.01).astype(jnp.bfloat16)
    out3 = jax.block_until_ready(
        langevin_layer(x3, w3, b3, tm=64, tn=128, tk=128, force_tiled=True)
    )
    ref3 = x3.astype(jnp.float32) @ w3.astype(jnp.float32) + b3.astype(jnp.float32)
    assert out3.shape == (M3, N3) and out3.dtype == jnp.bfloat16
    assert jnp.allclose(out3.astype(jnp.float32), ref3, atol=2e-2, rtol=2e-2)

    print("KERNEL_OK")
</pallas_src>

<mosaic_0001>
module attributes {stable_mosaic.version = 11 : i64} {
  func.func @_small_kernel(%arg0: i32, %arg1: memref<8x32xf32, #tpu.memory_space<vmem>>, %arg2: memref<32x16xf32, #tpu.memory_space<vmem>>, %arg3: memref<1x16xf32, #tpu.memory_space<vmem>>, %arg4: memref<8x16xf32, #tpu.memory_space<vmem>>) attributes {dimension_semantics = [#tpu.dimension_semantics<parallel>], iteration_bounds = array<i64: 1>, scalar_prefetch = 0 : i64, scratch_operands = 0 : i64, tpu.core_type = #tpu.core_type<tc>, window_params = [{transform_indices = @transform_0, window_bounds = array<i64: 8, 32>}, {pipeline_mode = #tpu.pipeline_mode<synchronous>, transform_indices = @transform_1, window_bounds = array<i64: 32, 16>}, {pipeline_mode = #tpu.pipeline_mode<synchronous>, transform_indices = @transform_2, window_bounds = array<i64: 1, 16>}, {transform_indices = @transform_3, window_bounds = array<i64: 8, 16>}]} {
    %c0 = arith.constant 0 : index
    %c0_0 = arith.constant 0 : index
    %0 = vector.load %arg1[%c0, %c0_0] : memref<8x32xf32, #tpu.memory_space<vmem>>, vector<8x32xf32>
    %c0_1 = arith.constant 0 : index
    %c0_2 = arith.constant 0 : index
    %1 = vector.load %arg2[%c0_1, %c0_2] : memref<32x16xf32, #tpu.memory_space<vmem>>, vector<32x16xf32>
    %cst = arith.constant dense<0.000000e+00> : vector<8x16xf32>
    %2 = tpu.matmul %0, %1, %cst {dimension_numbers = #tpu.dot_dimension_numbers<[1], [0], [0], [1], [0, 0, 1, 1], [], []>} : vector<8x32xf32>, vector<32x16xf32>, vector<8x16xf32> -> vector<8x16xf32>
    %c0_3 = arith.constant 0 : index
    %c0_4 = arith.constant 0 : index
    %3 = vector.load %arg3[%c0_3, %c0_4] : memref<1x16xf32, #tpu.memory_space<vmem>>, vector<1x16xf32>
    %4 = vector.broadcast %3 : vector<1x16xf32> to vector<8x16xf32>
    %5 = arith.addf %2, %4 : vector<8x16xf32>
    %c0_5 = arith.constant 0 : index
    %c0_6 = arith.constant 0 : index
    %6 = vector.load %arg4[%c0_5, %c0_6] : memref<8x16xf32, #tpu.memory_space<vmem>>, vector<8x16xf32>
    tpu.vector_store %arg4[%c0_5, %c0_6], %5 {strides = array<i32>} : memref<8x16xf32, #tpu.memory_space<vmem>>, vector<8x16xf32>,
    return
  }
  func.func @transform_0(%arg0: i32) -> (i32, i32) {
    %c0_i32 = arith.constant 0 : i32
    %c0_i32_0 = arith.constant 0 : i32
    return %arg0, %c0_i32 : i32, i32
  }
  func.func @transform_1(%arg0: i32) -> (i32, i32) {
    %c0_i32 = arith.constant 0 : i32
    %c0_i32_0 = arith.constant 0 : i32
    %c0_i32_1 = arith.constant 0 : i32
    return %c0_i32, %c0_i32_0 : i32, i32
  }
  func.func @transform_2(%arg0: i32) -> (i32, i32) {
    %c0_i32 = arith.constant 0 : i32
    %c0_i32_0 = arith.constant 0 : i32
    %c0_i32_1 = arith.constant 0 : i32
    return %c0_i32, %c0_i32_0 : i32, i32
  }
  func.func @transform_3(%arg0: i32) -> (i32, i32) {
    %c0_i32 = arith.constant 0 : i32
    %c0_i32_0 = arith.constant 0 : i32
    return %arg0, %c0_i32 : i32, i32
  }
}

</mosaic_0001>

<llo_original>
// kernel: tpu_custom_call.1
$region0: #{tpu_custom_call.1}
  #allocation0 [shape = 'u32[]', space=smem, size = 0x4, offset = 0x4, fixed_abs, tag = 'smem constant byte address 0x4 - core index']
  #allocation1 [shape = 'u32[144,128]{1,0:T(1,128)}', space=vmem, size = 0x12000, scoped, tag = 'internal scratch']
  %s0 = inlined_call_operand.vmem [shape: f32[8,32], index: 0, kind: input, shape index: {}]
  %s1 = inlined_call_operand.vmem [shape: f32[32,16], index: 1, kind: input, shape index: {}]
  %s2 = inlined_call_operand.vmem [shape: f32[1,16], index: 2, kind: input, shape index: {}]
  %s3 = inlined_call_operand.hbm [shape: f32[8,16], index: 3, kind: output, shape index: {}]
  %s4 = sld [smem:[#allocation0]]
  $region22: #{tpu_custom_call.1} parent=0
    _
  %s6 = ssub.s32 1, %s4
  %s7 = scalar_select 0, %s6, %s4
  $region1: #{tpu_custom_call.1} parent=0
    #allocation2 [shape = 'u8[4096]{0}', space=vmem, size = 0x1000, scoped, tag = 'output window, operand 0, single buffered']
    #allocation3 [shape = 's32[1]{0}', space=sflag, size = 0x4, scoped, tag = 'scoped memory for tpu_custom_call.1']
    %8 = vsyncpa [#allocation3], 0
    // Predicated region
    $region2: #{tpu_custom_call.1} parent=1 // pred_check
      _
    $region3: #{tpu_custom_call.1} parent=1 // pred_check_branch
      %10 = sbr.rel (0) target = $region5
    $region4: #{tpu_custom_call.1} parent=1 // pred_region
      _
    $region5: #{tpu_custom_call.1} parent=1 // pred_fallthru
      _
    // Predicated region
    $region6: #{tpu_custom_call.1} parent=1 // pred_check
      _
    $region7: #{tpu_custom_call.1} parent=1 // pred_check_branch
      %12 = sbr.rel (0) target = $region9
    $region8: #{tpu_custom_call.1} parent=1 // pred_region
      _
    $region9: #{tpu_custom_call.1} parent=1 // pred_fallthru
      _
    // Predicated region
    $region10: #{tpu_custom_call.1} parent=1 // pred_check
      _
    $region11: #{tpu_custom_call.1} parent=1 // pred_check_branch
      %14 = sbr.rel (0) target = $region13
    $region12: #{tpu_custom_call.1} parent=1 // pred_region
      _
    $region13: #{tpu_custom_call.1} parent=1 // pred_fallthru
      _
    %v15 = vld [vmem:[%s0] sm:$0xff]
    %v16 = vld [vmem:[%s1] sm:$0xff]
    %v17 = vld [vmem:[%s1 + $0x8] sm:$0xff]
    %v18 = vld [vmem:[%s1 + $0x10] sm:$0xff]
    %v19 = vld [vmem:[%s1 + $0x18] sm:$0xff]
    %v20 = vld [vmem:[%s2] sm:$0x1]
    %v22 = vlaneseq
    %v23 = vshrl.u32 %v22, 7
    %v24 = vsub.s32 0, %v23
    %v25 = vrot.slane %v20, %v24
    %vm27 = vcmask 261120
    %v29 = vsel %vm27, %v15, 0
    %31 = vmatprep.subr.mxu0 0.0
    %32 = vmatpush1.msra.mxu0 %v16
    %33 = vmatprep.subr.mxu0 0.0
    %34 = vmatpush1.msra.mxu0 %v17
    %35 = vmatprep.subr.mxu0 0.0
    %36 = vmatpush1.msra.mxu0 %v18
    %37 = vmatprep.subr.mxu0 0.0
    %38 = vmatpush1.msra.mxu0 %v19
    %39 = vmatprep.subr.mxu0 0.0
    %40 = vmatpush1.msra.mxu0 0.0
    %41 = vmatprep.subr.mxu0 0.0
    %42 = vmatpush1.msra.mxu0 0.0
    %43 = vmatprep.subr.mxu0 0.0
    %44 = vmatpush1.msra.mxu0 0.0
    %45 = vmatprep.subr.mxu0 0.0
    %46 = vmatpush1.msra.mxu0 0.0
    %47 = vmatprep.subr.mxu0 0.0
    %48 = vmatpush1.msra.mxu0 0.0
    %49 = vmatprep.subr.mxu0 0.0
    %50 = vmatpush1.msra.mxu0 0.0
    %51 = vmatprep.subr.mxu0 0.0
    %52 = vmatpush1.msra.mxu0 0.0
    %53 = vmatprep.subr.mxu0 0.0
    %54 = vmatpush1.msra.mxu0 0.0
    %55 = vmatprep.subr.mxu0 0.0
    %56 = vmatpush1.msra.mxu0 0.0
    %57 = vmatprep.subr.mxu0 0.0
    %58 = vmatpush1.msra.mxu0 0.0
    %59 = vmatprep.subr.mxu0 0.0
    %60 = vmatpush1.msra.mxu0 0.0
    %61 = vmatprep.subr.mxu0 0.0
    %62 = vmatpush1.msra.mxu0 0.0
    %63 = vmatprep.subr.mxu0 0.0
    %64 = vmatpush1.msra.mxu0 0.0
    %65 = vmatprep.subr.mxu0 0.0
    %66 = vmatpush1.msra.mxu0 0.0
    %67 = vmatprep.subr.mxu0 0.0
    %68 = vmatpush1.msra.mxu0 0.0
    %69 = vmatprep.subr.mxu0 0.0
    %70 = vmatpush1.msra.mxu0 0.0
    %71 = vmatprep.subr.mxu0 0.0
    %72 = vmatpush1.msra.mxu0 0.0
    %73 = vmatprep.subr.mxu0 0.0
    %74 = vmatpush1.msra.mxu0 0.0
    %75 = vmatprep.subr.mxu0 0.0
    %76 = vmatpush1.msra.mxu0 0.0
    %77 = vmatprep.subr.mxu0 0.0
    %78 = vmatpush1.msra.mxu0 0.0
    %79 = vmatprep.subr.mxu0 0.0
    %80 = vmatpush1.msra.mxu0 0.0
    %81 = vmatprep.subr.mxu0 0.0
    %82 = vmatpush1.msra.mxu0 0.0
    %83 = vmatprep.subr.mxu0 0.0
    %84 = vmatpush1.msra.mxu0 0.0
    %85 = vmatprep.subr.mxu0 0.0
    %86 = vmatpush1.msra.mxu0 0.0
    %87 = vmatprep.subr.mxu0 0.0
    %88 = vmatpush1.msra.mxu0 0.0
    %89 = vmatprep.subr.mxu0 0.0
    %90 = vmatpush1.msra.mxu0 0.0
    %91 = vmatprep.subr.mxu0 0.0
    %92 = vmatpush1.msra.mxu0 0.0
    %93 = vmatprep.subr.mxu0 0.0
    %94 = vmatpush1.msra.mxu0 0.0
    %95 = vmatprep.mubr.f32.mxu0 0.0
    %96 = vmatmul.mubr.f32.gmra.mrb[0].mxu0 %v29
    %v97 = vpop.f32.mrb[0].mxu0
    %v98 = vadd.f32 %v25, %v97
    %v99 = vpop.f32.mrb[0].mxu0
    %100 = vdwg.mxu0
    %vm101 = vcmask 130048
    %102 = vst.msk [vmem:[#allocation2] sm:$0xff] %vm101, %v98
    // Predicated region
    $region14: #{tpu_custom_call.1} parent=1 // pred_check
      _
    $region15: #{tpu_custom_call.1} parent=1 // pred_check_branch
      %104 = sbr.rel (0) target = $region17
    $region16: #{tpu_custom_call.1} parent=1 // pred_region
      %s106 = ssub.s32 128, 128
      %107 = vsyncadd [#allocation3], %s106
      %s109 = sshll.u32 [#allocation2], 4
      %s110 = int_to_ptr.vmem [resolvable:$true] %s109
      %112 = dma.vmem_to_hbm [thread:$0]  %s110, 128, %s3, [#allocation3]
    $region17: #{tpu_custom_call.1} parent=1 // pred_fallthru
      _
    // Predicated region
    $region18: #{tpu_custom_call.1} parent=1 // pred_check
      _
    $region19: #{tpu_custom_call.1} parent=1 // pred_check_branch
      %114 = sbr.rel (0) target = $region21
    $region20: #{tpu_custom_call.1} parent=1 // pred_region
      %115 = dma.done [#allocation3], 128
    $region21: #{tpu_custom_call.1} parent=1 // pred_fallthru
      _
    %116 = vsyncpa [#allocation3], 1

</llo_original>
